<compile_context>
chip_gen: v6e
topology: v6e:2x2x1
jax: 0.10.0
libtpu: 0.0.40
codegen_flags: <defaults>
</compile_context>

<pallas_src>
import functools

import jax
import jax.numpy as jnp
from jax.experimental import pallas as pl
from jax.experimental.pallas import tpu as pltpu

# ---------------- model hyper-parameters (defaults of the PyTorch module) ----
FIELD_SIZE = 8
EMBEDDING_SIZE = 4
DEEP_LAYERS = [32, 32]
H_CROSS_DEPTH = 3
D = FIELD_SIZE * EMBEDDING_SIZE            # 32: cross / deep input width
H1, H2 = DEEP_LAYERS
CAT_SIZE = D + H2                          # concat([x_cross, x_deep], 1) width

# row layout of the packed weight slab (wd):
#   rows [0, H1)        : W1 (out, in)
#   rows [H1, H1+H2)    : W2 (out, in)
#   row  H1+H2          : last-layer weight, cross half (length D)
#   row  H1+H2+1        : last-layer weight, deep half  (length H2)
WLX_ROW = H1 + H2
WLH_ROW = H1 + H2 + 1

# column layout of the packed "vector params" buffer (vp):
CW_COL = 0                                 # cols [0, 3): cross weights
CB_COL = CW_COL + H_CROSS_DEPTH            # cols [3, 6): cross biases
B1_COL = CB_COL + H_CROSS_DEPTH            # col 6: deep bias 1
B2_COL = B1_COL + 1                        # col 7: deep bias 2
BL_COL = B2_COL + 1                        # col 8: last-layer bias (row 0)
NC = 16                                    # padded column count

LANES = 128                                # vreg lane width
MAX_TILE_B = 8192                          # lanes per grid step for large batches
                                           # (x tile: 32*8192*4B = 1 MiB, well under
                                           #  the 32 MiB scoped-VMEM default)


def _round_up(x, m):
    return (x + m - 1) // m * m


def default_dtypes():
    """Per-TPU-generation (in_dtype, compute_dtype) for the activation path."""
    try:
        kind = jax.devices()[0].device_kind.lower()
    except Exception:
        kind = ""
    if "v6" in kind or "v7" in kind:
        # packed bf16 VPU: ~2x elementwise throughput, half the activation DMA.
        return jnp.bfloat16, jnp.bfloat16
    if "v5 lite" in kind or "v5e" in kind:
        # v5e has no bf16 VALU: ship bf16 (halve input bytes), compute in f32.
        return jnp.bfloat16, jnp.float32
    return jnp.float32, jnp.float32


# ------------------------------- Pallas kernel -------------------------------
def dcn_kernel(x_ref, wd_ref, vp_ref, out_ref, *, compute_dtype):
    """DCN forward for one batch tile, feature-major layout.

    x_ref  : (D, TILE_B)      embedded + value-scaled features (batch on lanes)
    wd_ref : (H1+H2+2, D)     packed deep weights + split last-layer weight rows
    vp_ref : (D, NC)          column-packed small params (cross w/b, biases, bl)
    out_ref: (1, TILE_B)      lane-dense output row (torch.sum(output, 1))
    """
    A = compute_dtype
    x0 = x_ref[...].astype(A)                                       # (D, TB)

    # ---- cross network:  x_l = <x0, x_l> * w_i + b_i + x_l ------------------
    cw = vp_ref[:, CW_COL:CW_COL + H_CROSS_DEPTH].astype(A)         # (D, 3)
    cb = vp_ref[:, CB_COL:CB_COL + H_CROSS_DEPTH].astype(A)         # (D, 3)
    xl = x0
    for i in range(H_CROSS_DEPTH):
        prod = (x0 * xl).astype(jnp.float32)                        # f32 accumulate
        dot = jnp.sum(prod, axis=0, keepdims=True)                  # (1, TB) f32
        xl = dot.astype(A) * cw[:, i:i + 1] + cb[:, i:i + 1] + xl   # (D, TB)

    # ---- deep network (eval: dropout = identity; ReLU activation) -----------
    w1 = wd_ref[0:H1, :].astype(A)                                  # (H1, D)
    w2 = wd_ref[H1:H1 + H2, :].astype(A)                            # (H2, H1)
    b1 = vp_ref[:, B1_COL:B1_COL + 1]                               # (H1, 1) f32
    b2 = vp_ref[:, B2_COL:B2_COL + 1]                               # (H2, 1) f32
    h = jnp.dot(w1, x0, preferred_element_type=jnp.float32) + b1
    h = jnp.maximum(h, 0.0).astype(A)                               # (H1, TB)
    h = jnp.dot(w2, h, preferred_element_type=jnp.float32) + b2
    h = jnp.maximum(h, 0.0).astype(A)                               # (H2, TB)

    # ---- final linear over concat([x_cross, x_deep]) — no concat ------------
    # Both reductions run as (1, D) @ (D, TB) MXU matmuls (MXU has large slack;
    # the VPU/XLU slots are the binding units for this kernel).
    wlx = wd_ref[WLX_ROW:WLX_ROW + 1, :].astype(A)                  # (1, D)
    wlh = wd_ref[WLH_ROW:WLH_ROW + 1, 0:H2].astype(A)               # (1, H2)
    bl = vp_ref[0:1, BL_COL:BL_COL + 1]                             # (1, 1) f32
    out = (jnp.dot(wlx, xl, preferred_element_type=jnp.float32)
           + jnp.dot(wlh, h, preferred_element_type=jnp.float32)
           + bl)                                                    # (1, TB) f32
    out_ref[...] = out


# ------------------------------- host wrapper --------------------------------
def pack_params(cw, cb, w1, b1, w2, b2, wl, bl):
    """Pack the 8 small parameter tensors into 2 kernel inputs (wd, vp)."""
    # Slab layout stores H1/H2-length vectors in D-row columns.
    assert D == H1 == H2, "packing layout assumes 32-wide square layers"
    wlx = wl[:D, 0][None, :]                                        # (1, D)
    wlh = wl[D:, 0][None, :]                                        # (1, H2==D)
    wd = jnp.concatenate([w1.T, w2.T, wlx, wlh], axis=0).astype(jnp.float32)
    vp = jnp.zeros((D, NC), jnp.float32)
    vp = vp.at[:, CW_COL:CW_COL + H_CROSS_DEPTH].set(cw.T)
    vp = vp.at[:, CB_COL:CB_COL + H_CROSS_DEPTH].set(cb.T)
    vp = vp.at[:, B1_COL].set(b1[0])
    vp = vp.at[:, B2_COL].set(b2[0])
    vp = vp.at[0, BL_COL].set(bl[0, 0])
    return wd, vp


def dcn_forward_pallas(x0_fm, wd, vp, *, in_dtype=None, compute_dtype=None):
    """x0_fm: (D, B) feature-major embedded features.  Returns (B,) logits."""
    if in_dtype is None or compute_dtype is None:
        auto_in, auto_cd = default_dtypes()
        in_dtype = auto_in if in_dtype is None else in_dtype
        compute_dtype = auto_cd if compute_dtype is None else compute_dtype

    d, B = x0_fm.shape
    assert d == D

    # Batch (lane) axis always padded to a multiple of 128 lanes; whenever the
    # padded batch is >= 256 we guarantee >= 2 grid steps so the 'parallel'
    # axis can shard across v7x's two TensorCores.  Padded lanes compute
    # garbage (no cross-lane reduction exists) and are sliced off below.
    b128 = _round_up(B, LANES)
    if b128 >= 2 * LANES:
        tile_b = min(MAX_TILE_B, _round_up(pl.cdiv(b128, 2), LANES))
    else:
        tile_b = b128
    n_tiles = pl.cdiv(b128, tile_b)
    b_pad = tile_b * n_tiles

    x = x0_fm.astype(in_dtype)
    if b_pad != B:
        x = jnp.pad(x, ((0, 0), (0, b_pad - B)))

    kernel = functools.partial(dcn_kernel, compute_dtype=compute_dtype)
    out = pl.pallas_call(
        kernel,
        out_shape=jax.ShapeDtypeStruct((1, b_pad), jnp.float32),
        grid=(n_tiles,),
        in_specs=[
            pl.BlockSpec((D, tile_b), lambda i: (0, i)),   # x tiled over batch lanes
            pl.BlockSpec(wd.shape, lambda i: (0, 0)),      # packed deep weights
            pl.BlockSpec(vp.shape, lambda i: (0, 0)),      # packed vector params
        ],
        out_specs=pl.BlockSpec((1, tile_b), lambda i: (0, i)),
        compiler_params=pltpu.CompilerParams(
            dimension_semantics=("parallel",)),
    )(x, wd, vp)
    return out[0, :B]                                      # (B,)


# ---------------------------- plain-JAX glue / init ---------------------------
def embed_inputs(Xi, Xv, tables, dtype=jnp.float32):
    """Build x0 FEATURE-MAJOR: (D, B).  Avoids a separate (B, D) -> (D, B)
    transpose pass over the activations before the kernel."""
    rows = []
    for i in range(FIELD_SIZE):
        e = tables[i][Xi[:, i, 0]]                              # (B, E)
        rows.append((e * Xv[:, i:i + 1]).T)                     # (E, B)
    return jnp.concatenate(rows, axis=0).astype(dtype)          # (D, B)


def dcn_reference(x0_bm, cw, cb, w1, b1, w2, b2, wl, bl):
    """Pure-JAX batch-major reference for correctness checking."""
    xl = x0_bm
    for i in range(H_CROSS_DEPTH):
        dot = jnp.sum(x0_bm * xl, axis=1, keepdims=True)
        xl = dot * cw[i][None, :] + cb[i][None, :] + xl
    h = jnp.maximum(x0_bm @ w1 + b1, 0.0)
    h = jnp.maximum(h @ w2 + b2, 0.0)
    out = jnp.concatenate([xl, h], axis=1) @ wl + bl
    return jnp.sum(out, axis=1)


def init_params(key):
    feature_sizes = [10, 20, 30, 40, 50, 60, 70, 80]
    assert len(feature_sizes) == FIELD_SIZE
    keys = jax.random.split(key, 32)
    k = iter(keys)

    tables = [jax.random.normal(next(k), (fs, EMBEDDING_SIZE), jnp.float32)
              for fs in feature_sizes]

    cw = jax.random.normal(next(k), (H_CROSS_DEPTH, D), jnp.float32)
    cb = jax.random.normal(next(k), (H_CROSS_DEPTH, D), jnp.float32)
    w1 = jax.random.normal(next(k), (D, H1), jnp.float32) * 0.1
    b1 = jax.random.normal(next(k), (1, H1), jnp.float32) * 0.1
    w2 = jax.random.normal(next(k), (H1, H2), jnp.float32) * 0.1
    b2 = jax.random.normal(next(k), (1, H2), jnp.float32) * 0.1
    wl = jax.random.normal(next(k), (CAT_SIZE, 1), jnp.float32) * 0.1
    bl = jax.random.normal(next(k), (1, 1), jnp.float32) * 0.1

    return tables, feature_sizes, (cw, cb, w1, b1, w2, b2, wl, bl)


def rel_err(a, b):
    a = jnp.asarray(a, jnp.float32)
    b = jnp.asarray(b, jnp.float32)
    return float(jnp.linalg.norm(a - b) / (jnp.linalg.norm(b) + 1e-12))


if __name__ == "__main__":
    key = jax.random.PRNGKey(0)
    k_param, k_xi, k_xv = jax.random.split(key, 3)

    tables, feature_sizes, params = init_params(k_param)

    # Small demo batch, but > 256 so the grid splits into >= 2 'parallel' steps.
    # NOTE: perf tuning (tile size, megacore, dtype) only shows up at production
    # batch sizes (thousands+); this run is a correctness check, not a benchmark.
    B = 300
    xi_keys = jax.random.split(k_xi, FIELD_SIZE)
    Xi = jnp.stack(
        [jax.random.randint(xi_keys[i], (B, 1), 0, fs, dtype=jnp.int32)
         for i, fs in enumerate(feature_sizes)], axis=1)            # (B, F, 1)
    Xv = jax.random.uniform(k_xv, (B, FIELD_SIZE), jnp.float32)     # (B, F)

    x0_fm = embed_inputs(Xi, Xv, tables)                            # (D, B)
    wd, vp = pack_params(*params)
    ref = dcn_reference(x0_fm.T, *params)                           # (B,)

    # 1) f32 path, multi-tile grid (two 'parallel' steps -> both v7x TCs).
    out_f32 = jax.block_until_ready(dcn_forward_pallas(
        x0_fm, wd, vp, in_dtype=jnp.float32, compute_dtype=jnp.float32))
    assert out_f32.shape == (B,)
    assert rel_err(out_f32, ref) < 2e-3, rel_err(out_f32, ref)

    # 2) tiny batch (16 -> padded to a single 128-lane tile).
    out_small = jax.block_until_ready(dcn_forward_pallas(
        x0_fm[:, :16], wd, vp, in_dtype=jnp.float32, compute_dtype=jnp.float32))
    assert out_small.shape == (16,)
    assert rel_err(out_small, ref[:16]) < 5e-3, rel_err(out_small, ref[:16])

    # 3) bf16 activation path (v6e/v7x production default); bf16-level tolerance.
    out_bf16 = jax.block_until_ready(dcn_forward_pallas(
        x0_fm, wd, vp, in_dtype=jnp.bfloat16, compute_dtype=jnp.bfloat16))
    assert out_bf16.shape == (B,)
    assert rel_err(out_bf16, ref) < 1e-1, rel_err(out_bf16, ref)

    # 4) device-tuned default path (dtype chosen per TPU generation).
    auto_in, auto_cd = default_dtypes()
    out_auto = jax.block_until_ready(dcn_forward_pallas(x0_fm, wd, vp))
    auto_tol = 2e-3 if (auto_in == jnp.float32 and auto_cd == jnp.float32) else 1e-1
    assert rel_err(out_auto, ref) < auto_tol, rel_err(out_auto, ref)

    print("KERNEL_OK")
</pallas_src>

<mosaic_0001>
module attributes {stable_mosaic.version = 11 : i64} {
  func.func @dcn_kernel(%arg0: i32, %arg1: memref<32x256xf32, #tpu.memory_space<vmem>>, %arg2: memref<66x32xf32, #tpu.memory_space<vmem>>, %arg3: memref<32x16xf32, #tpu.memory_space<vmem>>, %arg4: memref<1x256xf32, #tpu.memory_space<vmem>>) attributes {dimension_semantics = [#tpu.dimension_semantics<parallel>], iteration_bounds = array<i64: 2>, scalar_prefetch = 0 : i64, scratch_operands = 0 : i64, tpu.core_type = #tpu.core_type<tc>, window_params = [{transform_indices = @transform_0, window_bounds = array<i64: 32, 256>}, {pipeline_mode = #tpu.pipeline_mode<synchronous>, transform_indices = @transform_1, window_bounds = array<i64: 66, 32>}, {pipeline_mode = #tpu.pipeline_mode<synchronous>, transform_indices = @transform_2, window_bounds = array<i64: 32, 16>}, {transform_indices = @transform_3, window_bounds = array<i64: 1, 256>}]} {
    %c0 = arith.constant 0 : index
    %c0_0 = arith.constant 0 : index
    %0 = vector.load %arg1[%c0, %c0_0] : memref<32x256xf32, #tpu.memory_space<vmem>>, vector<32x256xf32>
    %c0_1 = arith.constant 0 : index
    %c0_2 = arith.constant 0 : index
    %1 = vector.load %arg3[%c0_1, %c0_2] : memref<32x16xf32, #tpu.memory_space<vmem>>, vector<32x3xf32>
    %c0_3 = arith.constant 0 : index
    %c3 = arith.constant 3 : index
    %2 = vector.load %arg3[%c0_3, %c3] : memref<32x16xf32, #tpu.memory_space<vmem>>, vector<32x3xf32>
    %3 = arith.mulf %0, %0 : vector<32x256xf32>
    %cst = arith.constant dense<0.000000e+00> : vector<256xf32>
    %4 = vector.multi_reduction <add>, %3, %cst [0] : vector<32x256xf32> to vector<256xf32>
    %5 = vector.shape_cast %4 : vector<256xf32> to vector<1x256xf32>
    %6 = vector.extract_strided_slice %1 {offsets = [0, 0], sizes = [32, 1], strides = [1, 1]} : vector<32x3xf32> to vector<32x1xf32>
    %7 = vector.broadcast %5 : vector<1x256xf32> to vector<32x256xf32>
    %8 = vector.broadcast %6 : vector<32x1xf32> to vector<32x256xf32>
    %9 = arith.mulf %7, %8 : vector<32x256xf32>
    %10 = vector.extract_strided_slice %2 {offsets = [0, 0], sizes = [32, 1], strides = [1, 1]} : vector<32x3xf32> to vector<32x1xf32>
    %11 = vector.broadcast %10 : vector<32x1xf32> to vector<32x256xf32>
    %12 = arith.addf %9, %11 : vector<32x256xf32>
    %13 = arith.addf %12, %0 : vector<32x256xf32>
    %14 = arith.mulf %0, %13 : vector<32x256xf32>
    %cst_4 = arith.constant dense<0.000000e+00> : vector<256xf32>
    %15 = vector.multi_reduction <add>, %14, %cst_4 [0] : vector<32x256xf32> to vector<256xf32>
    %16 = vector.shape_cast %15 : vector<256xf32> to vector<1x256xf32>
    %17 = vector.extract_strided_slice %1 {offsets = [0, 1], sizes = [32, 1], strides = [1, 1]} : vector<32x3xf32> to vector<32x1xf32>
    %18 = vector.broadcast %16 : vector<1x256xf32> to vector<32x256xf32>
    %19 = vector.broadcast %17 : vector<32x1xf32> to vector<32x256xf32>
    %20 = arith.mulf %18, %19 : vector<32x256xf32>
    %21 = vector.extract_strided_slice %2 {offsets = [0, 1], sizes = [32, 1], strides = [1, 1]} : vector<32x3xf32> to vector<32x1xf32>
    %22 = vector.broadcast %21 : vector<32x1xf32> to vector<32x256xf32>
    %23 = arith.addf %20, %22 : vector<32x256xf32>
    %24 = arith.addf %23, %13 : vector<32x256xf32>
    %25 = arith.mulf %0, %24 : vector<32x256xf32>
    %cst_5 = arith.constant dense<0.000000e+00> : vector<256xf32>
    %26 = vector.multi_reduction <add>, %25, %cst_5 [0] : vector<32x256xf32> to vector<256xf32>
    %27 = vector.shape_cast %26 : vector<256xf32> to vector<1x256xf32>
    %28 = vector.extract_strided_slice %1 {offsets = [0, 2], sizes = [32, 1], strides = [1, 1]} : vector<32x3xf32> to vector<32x1xf32>
    %29 = vector.broadcast %27 : vector<1x256xf32> to vector<32x256xf32>
    %30 = vector.broadcast %28 : vector<32x1xf32> to vector<32x256xf32>
    %31 = arith.mulf %29, %30 : vector<32x256xf32>
    %32 = vector.extract_strided_slice %2 {offsets = [0, 2], sizes = [32, 1], strides = [1, 1]} : vector<32x3xf32> to vector<32x1xf32>
    %33 = vector.broadcast %32 : vector<32x1xf32> to vector<32x256xf32>
    %34 = arith.addf %31, %33 : vector<32x256xf32>
    %35 = arith.addf %34, %24 : vector<32x256xf32>
    %c0_6 = arith.constant 0 : index
    %c0_7 = arith.constant 0 : index
    %36 = vector.load %arg2[%c0_6, %c0_7] : memref<66x32xf32, #tpu.memory_space<vmem>>, vector<32x32xf32>
    %c32 = arith.constant 32 : index
    %c0_8 = arith.constant 0 : index
    %37 = vector.load %arg2[%c32, %c0_8] : memref<66x32xf32, #tpu.memory_space<vmem>>, vector<32x32xf32>
    %c0_9 = arith.constant 0 : index
    %c6 = arith.constant 6 : index
    %38 = vector.load %arg3[%c0_9, %c6] : memref<32x16xf32, #tpu.memory_space<vmem>>, vector<32x1xf32>
    %c0_10 = arith.constant 0 : index
    %c7 = arith.constant 7 : index
    %39 = vector.load %arg3[%c0_10, %c7] : memref<32x16xf32, #tpu.memory_space<vmem>>, vector<32x1xf32>
    %cst_11 = arith.constant dense<0.000000e+00> : vector<32x256xf32>
    %40 = tpu.matmul %36, %0, %cst_11 {dimension_numbers = #tpu.dot_dimension_numbers<[1], [0], [0], [1], [0, 0, 1, 1], [], []>} : vector<32x32xf32>, vector<32x256xf32>, vector<32x256xf32> -> vector<32x256xf32>
    %41 = vector.broadcast %38 : vector<32x1xf32> to vector<32x256xf32>
    %42 = arith.addf %40, %41 : vector<32x256xf32>
    %cst_12 = arith.constant 0.000000e+00 : f32
    %43 = vector.broadcast %cst_12 : f32 to vector<32x256xf32>
    %44 = arith.maximumf %42, %43 : vector<32x256xf32>
    %cst_13 = arith.constant dense<0.000000e+00> : vector<32x256xf32>
    %45 = tpu.matmul %37, %44, %cst_13 {dimension_numbers = #tpu.dot_dimension_numbers<[1], [0], [0], [1], [0, 0, 1, 1], [], []>} : vector<32x32xf32>, vector<32x256xf32>, vector<32x256xf32> -> vector<32x256xf32>
    %46 = vector.broadcast %39 : vector<32x1xf32> to vector<32x256xf32>
    %47 = arith.addf %45, %46 : vector<32x256xf32>
    %cst_14 = arith.constant 0.000000e+00 : f32
    %48 = vector.broadcast %cst_14 : f32 to vector<32x256xf32>
    %49 = arith.maximumf %47, %48 : vector<32x256xf32>
    %c64 = arith.constant 64 : index
    %c0_15 = arith.constant 0 : index
    %50 = vector.load %arg2[%c64, %c0_15] : memref<66x32xf32, #tpu.memory_space<vmem>>, vector<1x32xf32>
    %c65 = arith.constant 65 : index
    %c0_16 = arith.constant 0 : index
    %51 = vector.load %arg2[%c65, %c0_16] : memref<66x32xf32, #tpu.memory_space<vmem>>, vector<1x32xf32>
    %c0_17 = arith.constant 0 : index
    %c8 = arith.constant 8 : index
    %52 = vector.load %arg3[%c0_17, %c8] : memref<32x16xf32, #tpu.memory_space<vmem>>, vector<1x1xf32>
    %cst_18 = arith.constant dense<0.000000e+00> : vector<1x256xf32>
    %53 = tpu.matmul %50, %35, %cst_18 {dimension_numbers = #tpu.dot_dimension_numbers<[1], [0], [0], [1], [0, 0, 1, 1], [], []>} : vector<1x32xf32>, vector<32x256xf32>, vector<1x256xf32> -> vector<1x256xf32>
    %cst_19 = arith.constant dense<0.000000e+00> : vector<1x256xf32>
    %54 = tpu.matmul %51, %49, %cst_19 {dimension_numbers = #tpu.dot_dimension_numbers<[1], [0], [0], [1], [0, 0, 1, 1], [], []>} : vector<1x32xf32>, vector<32x256xf32>, vector<1x256xf32> -> vector<1x256xf32>
    %55 = arith.addf %53, %54 : vector<1x256xf32>
    %56 = vector.broadcast %52 : vector<1x1xf32> to vector<1x256xf32>
    %57 = arith.addf %55, %56 : vector<1x256xf32>
    %c0_20 = arith.constant 0 : index
    %c0_21 = arith.constant 0 : index
    %58 = vector.load %arg4[%c0_20, %c0_21] : memref<1x256xf32, #tpu.memory_space<vmem>>, vector<1x256xf32>
    tpu.vector_store %arg4[%c0_20, %c0_21], %57 {strides = array<i32>} : memref<1x256xf32, #tpu.memory_space<vmem>>, vector<1x256xf32>,
    return
  }
  func.func @transform_0(%arg0: i32) -> (i32, i32) {
    %c0_i32 = arith.constant 0 : i32
    %c0_i32_0 = arith.constant 0 : i32
    return %c0_i32, %arg0 : i32, i32
  }
  func.func @transform_1(%arg0: i32) -> (i32, i32) {
    %c0_i32 = arith.constant 0 : i32
    %c0_i32_0 = arith.constant 0 : i32
    %c0_i32_1 = arith.constant 0 : i32
    return %c0_i32, %c0_i32_0 : i32, i32
  }
  func.func @transform_2(%arg0: i32) -> (i32, i32) {
    %c0_i32 = arith.constant 0 : i32
    %c0_i32_0 = arith.constant 0 : i32
    %c0_i32_1 = arith.constant 0 : i32
    return %c0_i32, %c0_i32_0 : i32, i32
  }
  func.func @transform_3(%arg0: i32) -> (i32, i32) {
    %c0_i32 = arith.constant 0 : i32
    %c0_i32_0 = arith.constant 0 : i32
    return %c0_i32, %arg0 : i32, i32
  }
}

</mosaic_0001>

<llo_original>
// kernel: tpu_custom_call.1
$region0: #{tpu_custom_call.1}
  #allocation0 [shape = 'u32[]', space=smem, size = 0x4, offset = 0x4, fixed_abs, tag = 'smem constant byte address 0x4 - core index']
  #allocation1 [shape = 'u32[144,128]{1,0:T(1,128)}', space=vmem, size = 0x12000, scoped, tag = 'internal scratch']
  %s0 = inlined_call_operand.vmem [shape: f32[32,512], index: 0, kind: input, shape index: {}]
  %s1 = inlined_call_operand.vmem [shape: f32[66,32], index: 1, kind: input, shape index: {}]
  %s2 = inlined_call_operand.vmem [shape: f32[32,16], index: 2, kind: input, shape index: {}]
  %s3 = inlined_call_operand.hbm [shape: f32[1,512], index: 3, kind: output, shape index: {}]
  %s4 = sld [smem:[#allocation0]]
  $region68: #{tpu_custom_call.1} parent=0
    _
  %s6 = ssub.s32 1, %s4
  %s7 = scalar_select 0, %s6, %s4
  $region1: #{tpu_custom_call.1} parent=0
    #allocation2 [shape = 'u8[65536]{0}', space=vmem, size = 0x10000, scoped, tag = 'input window, operand 0']
    #allocation3 [shape = 'u8[2048]{0}', space=vmem, size = 0x800, scoped, tag = 'output window, operand 0']
    #allocation4 [shape = 's32[2]{0}', space=sflag, size = 0x8, scoped, tag = 'scoped memory for tpu_custom_call.1']
    %8 = vsyncpa [#allocation4], 0
    %s9 = scalar_lea.sflag [#allocation4], 1
    %10 = vsyncpa %s9, 0
    loop: start=0, step=1, limit=4
    $region2: #{tpu_custom_call.1} parent=1 // loop_pre_header
      _
    $region3: #{tpu_custom_call.1} parent=1 // loop_header
      %s12 = sphi 0, %s16
      %p13 = scmp.ge.s32.totalorder %s12, 4
      %s22 = sphi 0, %s24
      %s25 = sphi 0, %s22
      %s26 = sphi 0, %s25
      %s42 = sphi 0, %s26
      %s46 = sphi 0, %s46
      %s48 = sphi 0, %s46
      %s49 = sphi 0, %s48
      %s63 = sphi 0, %s49
      %s67 = sphi 0, %s67
      %s69 = sphi 0, %s67
      %s70 = sphi 0, %s69
      %s84 = sphi 0, %s70
      %s90 = sphi 0, %s92
      %s93 = sphi 0, %s90
      %s94 = sphi 0, %s93
      %s110 = sphi 0, %s94
    $region4: #{tpu_custom_call.1} parent=1 // loop_header_branch
      %15 = sbr.rel (%p13) target = $region8
    $region5: #{tpu_custom_call.1} parent=1 // loop_body
      %s17 = ssub.s32 %s12, 1
      %s18 = ssub.s32 %s12, 2
      %s19 = sadd.s32 %s12, 1
      %s20 = ssub.s32 %s12, %s19
      %p21 = scmp.eq.s32.totalorder %s20, 0
      %s23 = sadd.s32 %s22, 1
      %s24 = scalar_select %p21, %s22, %s23
      %p27 = pneg %p21
      %p28 = scmp.eq.s32.totalorder %s12, 1
      %p29 = por %p27, %p28
      %p30 = scmp.ne.s32.totalorder %s22, %s25
      %p31 = scmp.eq.s32.totalorder %s12, 0
      %p32 = por %p30, %p31
      %p33 = scmp.ne.s32.totalorder %s22, %s25
      %p34 = scmp.eq.s32.totalorder %s17, 1
      %p35 = por %p33, %p34
      %p36 = scmp.ne.s32.totalorder %s25, %s26
      %p37 = scmp.eq.s32.totalorder %s17, 0
      %p38 = por %p36, %p37
      %p39 = scmp.ne.s32.totalorder %s25, %s26
      %p40 = scmp.eq.s32.totalorder %s18, 1
      %p41 = por %p39, %p40
      %p43 = scmp.ne.s32.totalorder %s26, %s42
      %p44 = scmp.eq.s32.totalorder %s18, 0
      %p45 = por %p43, %p44
      %s47 = sadd.s32 %s46, 1
      %p50 = scmp.eq.s32.totalorder %s12, 1
      %p51 = scmp.ne.s32.totalorder %s46, %s48
      %p52 = scmp.eq.s32.totalorder %s12, 0
      %p53 = por %p51, %p52
      %p54 = scmp.ne.s32.totalorder %s46, %s48
      %p55 = scmp.eq.s32.totalorder %s17, 1
      %p56 = por %p54, %p55
      %p57 = scmp.ne.s32.totalorder %s48, %s49
      %p58 = scmp.eq.s32.totalorder %s17, 0
      %p59 = por %p57, %p58
      %p60 = scmp.ne.s32.totalorder %s48, %s49
      %p61 = scmp.eq.s32.totalorder %s18, 1
      %p62 = por %p60, %p61
      %p64 = scmp.ne.s32.totalorder %s49, %s63
      %p65 = scmp.eq.s32.totalorder %s18, 0
      %p66 = por %p64, %p65
      %s68 = sadd.s32 %s67, 1
      %p71 = scmp.eq.s32.totalorder %s12, 1
      %p72 = scmp.ne.s32.totalorder %s67, %s69
      %p73 = scmp.eq.s32.totalorder %s12, 0
      %p74 = por %p72, %p73
      %p75 = scmp.ne.s32.totalorder %s67, %s69
      %p76 = scmp.eq.s32.totalorder %s17, 1
      %p77 = por %p75, %p76
      %p78 = scmp.ne.s32.totalorder %s69, %s70
      %p79 = scmp.eq.s32.totalorder %s17, 0
      %p80 = por %p78, %p79
      %p81 = scmp.ne.s32.totalorder %s69, %s70
      %p82 = scmp.eq.s32.totalorder %s18, 1
      %p83 = por %p81, %p82
      %p85 = scmp.ne.s32.totalorder %s70, %s84
      %p86 = scmp.eq.s32.totalorder %s18, 0
      %p87 = por %p85, %p86
      %s88 = ssub.s32 %s12, %s19
      %p89 = scmp.eq.s32.totalorder %s88, 0
      %s91 = sadd.s32 %s90, 1
      %s92 = scalar_select %p89, %s90, %s91
      %p95 = pneg %p89
      %p96 = scmp.eq.s32.totalorder %s12, 1
      %p97 = por %p95, %p96
      %p98 = scmp.ne.s32.totalorder %s90, %s93
      %p99 = scmp.eq.s32.totalorder %s12, 0
      %p100 = por %p98, %p99
      %p101 = scmp.ne.s32.totalorder %s90, %s93
      %p102 = scmp.eq.s32.totalorder %s17, 1
      %p103 = por %p101, %p102
      %p104 = scmp.ne.s32.totalorder %s93, %s94
      %p105 = scmp.eq.s32.totalorder %s17, 0
      %p106 = por %p104, %p105
      %p107 = scmp.ne.s32.totalorder %s93, %s94
      %p108 = scmp.eq.s32.totalorder %s18, 1
      %p109 = por %p107, %p108
      %p111 = scmp.ne.s32.totalorder %s94, %s110
      %p112 = scmp.eq.s32.totalorder %s18, 0
      %p113 = por %p111, %p112
      %p114 = scmp.le.s32.totalorder 1, %s12
      %p115 = scmp.lt.s32.totalorder %s12, 3
      %p116 = pnand %p114, %p115
      %p117 = pneg %p116
      // Predicated region
      $region9: #{tpu_custom_call.1} parent=5 // pred_check
        _
      $region10: #{tpu_custom_call.1} parent=5 // pred_check_branch
        %119 = sbr.rel (%p116) target = $region12
      $region11: #{tpu_custom_call.1} parent=5 // pred_region
        %s120 = ssub.s32 %s12, 1
        // Predicated region
        $region13: #{tpu_custom_call.1} parent=11 // pred_check
          %p121 = pneg %p59
        $region14: #{tpu_custom_call.1} parent=11 // pred_check_branch
          %123 = sbr.rel (%p121) target = $region16
        $region15: #{tpu_custom_call.1} parent=11 // pred_region
          _
        $region16: #{tpu_custom_call.1} parent=11 // pred_fallthru
          _
        // Predicated region
        $region17: #{tpu_custom_call.1} parent=11 // pred_check
          %p124 = pneg %p80
        $region18: #{tpu_custom_call.1} parent=11 // pred_check_branch
          %126 = sbr.rel (%p124) target = $region20
        $region19: #{tpu_custom_call.1} parent=11 // pred_region
          _
        $region20: #{tpu_custom_call.1} parent=11 // pred_fallthru
          _
      $region12: #{tpu_custom_call.1} parent=5 // pred_fallthru
        _
      %p127 = scmp.lt.s32.totalorder %s12, 2
      // Predicated region
      $region21: #{tpu_custom_call.1} parent=5 // pred_check
        %p128 = pneg %p127
      $region22: #{tpu_custom_call.1} parent=5 // pred_check_branch
        %130 = sbr.rel (%p128) target = $region24
      $region23: #{tpu_custom_call.1} parent=5 // pred_region
        // Predicated region
        $region25: #{tpu_custom_call.1} parent=23 // pred_check
          %p131 = pneg %p32
        $region26: #{tpu_custom_call.1} parent=23 // pred_check_branch
          %133 = sbr.rel (%p131) target = $region28
        $region27: #{tpu_custom_call.1} parent=23 // pred_region
          %s134 = sand.u32 %s22, 1
          %s135 = sand.u32 %s22, 1
          %s136 = smul.addr %s135, 64
          %s137 = scalar_lea.vmem [#allocation2], %s136
          %s138 = smul.u32 2, %s12
          %s139 = smul.addr %s138, 8
          %s140 = scalar_lea.vmem %s0, %s139
          // Predicated region
          $region29: #{tpu_custom_call.1} parent=27 // pred_check
            _
          $region30: #{tpu_custom_call.1} parent=27 // pred_check_branch
            %142 = sbr.rel (0) target = $region32
          $region31: #{tpu_custom_call.1} parent=27 // pred_region
            // Predicated region
            $region33: #{tpu_custom_call.1} parent=31 // pred_check
              _
            $region34: #{tpu_custom_call.1} parent=31 // pred_check_branch
              %144 = sbr.rel (0) target = $region36
            $region35: #{tpu_custom_call.1} parent=31 // pred_region
              loop: start=0, step=1, limit=1
              $region37: #{tpu_custom_call.1} parent=35 // loop_pre_header
                _
              $region38: #{tpu_custom_call.1} parent=35 // loop_header
                %s146 = sphi 0, %s150
                %p147 = scmp.ge.s32.totalorder %s146, 1
                %s151 = sphi %s140, %s140
                %s152 = sphi %s137, %s137
              $region39: #{tpu_custom_call.1} parent=35 // loop_header_branch
                %149 = sbr.rel (%p147) target = $region43
              $region40: #{tpu_custom_call.1} parent=35 // loop_body
                %v153 = vld [vmem:[%s151] sm:$0xff]
                %154 = vst [vmem:[%s152] sm:$0xff] %v153
                %v155 = vld [vmem:[%s151 + $0x8] sm:$0xff]
                %156 = vst [vmem:[%s152 + $0x8] sm:$0xff] %v155
                %v157 = vld [vmem:[%s151 + $0x20] sm:$0xff]
                %158 = vst [vmem:[%s152 + $0x10] sm:$0xff] %v157
                %v159 = vld [vmem:[%s151 + $0x28] sm:$0xff]
                %160 = vst [vmem:[%s152 + $0x18] sm:$0xff] %v159
                %v161 = vld [vmem:[%s151 + $0x40] sm:$0xff]
                %162 = vst [vmem:[%s152 + $0x20] sm:$0xff] %v161
                %v163 = vld [vmem:[%s151 + $0x48] sm:$0xff]
                %164 = vst [vmem:[%s152 + $0x28] sm:$0xff] %v163
                %v165 = vld [vmem:[%s151 + $0x60] sm:$0xff]
                %166 = vst [vmem:[%s152 + $0x30] sm:$0xff] %v165
                %v167 = vld [vmem:[%s151 + $0x68] sm:$0xff]
                %168 = vst [vmem:[%s152 + $0x38] sm:$0xff] %v167
              $region41: #{tpu_custom_call.1} parent=35 // loop_footer
                %s150 = sadd.s32 1, %s146
              $region42: #{tpu_custom_call.1} parent=35 // loop_footer_branch
                %145 = sbr.rel target = $region38
              $region43: #{tpu_custom_call.1} parent=35 // loop_exit
                _
            $region36: #{tpu_custom_call.1} parent=31 // pred_fallthru
              _
            // Predicated region
            $region44: #{tpu_custom_call.1} parent=31 // pred_check
              _
            $region45: #{tpu_custom_call.1} parent=31 // pred_check_branch
              %170 = sbr.rel target = $region47
            $region46: #{tpu_custom_call.1} parent=31 // pred_region
              _
            $region47: #{tpu_custom_call.1} parent=31 // pred_fallthru
              _
          $region32: #{tpu_custom_call.1} parent=27 // pred_fallthru
            _
          %171 = vnop
        $region28: #{tpu_custom_call.1} parent=23 // pred_fallthru
          _
      $region24: #{tpu_custom_call.1} parent=5 // pred_fallthru
        _
      %p172 = scmp.le.s32.totalorder 1, %s12
      %p173 = scmp.lt.s32.totalorder %s12, 3
      %p174 = pnand %p172, %p173
      %p175 = pneg %p174
      // Predicated region
      $region48: #{tpu_custom_call.1} parent=5 // pred_check
        _
      $region49: #{tpu_custom_call.1} parent=5 // pred_check_branch
        %177 = sbr.rel (%p174) target = $region51
      $region50: #{tpu_custom_call.1} parent=5 // pred_region
        %s178 = ssub.s32 %s12, 1
        %s179 = sand.u32 %s25, 1
        %s180 = sand.u32 %s25, 1
        %s181 = smul.addr %s180, 64
        %s182 = scalar_lea.vmem [#allocation2], %s181
        // Predicated region
        $region52: #{tpu_custom_call.1} parent=50 // pred_check
          %p183 = pneg %p38
        $region53: #{tpu_custom_call.1} parent=50 // pred_check_branch
          %185 = sbr.rel (%p183) target = $region55
        $region54: #{tpu_custom_call.1} parent=50 // pred_region
          _
        $region55: #{tpu_custom_call.1} parent=50 // pred_fallthru
          _
        %s186 = sand.u32 %s25, 1
        %s187 = sand.u32 %s25, 1
        %s188 = smul.addr %s187, 64
        %s189 = scalar_lea.vmem [#allocation2], %s188
        %p190 = pneg %p38
        %p191 = pneg %p35
        %p192 = pneg %p59
        %p193 = pneg %p56
        %p194 = pneg %p80
        %p195 = pneg %p77
        %p196 = pneg %p106
        %p197 = pneg %p103
        %s198 = sand.u32 %s93, 1
        %s199 = scalar_lea.sflag [#allocation4], %s198
        %s200 = sand.u32 %s93, 1
        %s201 = smul.addr %s200, 2
        %s202 = scalar_lea.vmem [#allocation3], %s201
        %s203 = smul.u32 2, %s17
        %s204 = smul.u32 2, %s17
        %v205 = vld [vmem:[%s182] sm:$0xff]
        %v206 = vld [vmem:[%s182 + $0x8] sm:$0xff]
        %v207 = vld [vmem:[%s182 + $0x10] sm:$0xff]
        %v208 = vld [vmem:[%s182 + $0x18] sm:$0xff]
        %v209 = vld [vmem:[%s182 + $0x20] sm:$0xff]
        %v210 = vld [vmem:[%s182 + $0x28] sm:$0xff]
        %v211 = vld [vmem:[%s182 + $0x30] sm:$0xff]
        %v212 = vld [vmem:[%s182 + $0x38] sm:$0xff]
        %v213 = vld [vmem:[%s2] sm:$0xff]
        %v214 = vld [vmem:[%s2 + $0x8] sm:$0xff]
        %v215 = vld [vmem:[%s2 + $0x10] sm:$0xff]
        %v216 = vld [vmem:[%s2 + $0x18] sm:$0xff]
        %v217 = vmul.f32 %v205, %v205
        %v218 = vmul.f32 %v206, %v206
        %v219 = vmul.f32 %v207, %v207
        %v220 = vmul.f32 %v208, %v208
        %v221 = vmul.f32 %v209, %v209
        %v222 = vmul.f32 %v210, %v210
        %v223 = vmul.f32 %v211, %v211
        %v224 = vmul.f32 %v212, %v212
        %v225 = vadd.f32 %v217, %v219
        %v226 = vadd.f32 %v225, %v221
        %v227 = vadd.f32 %v226, %v223
        %v228 = vrot.slane %v227, 4
        %v229 = vadd.f32 %v227, %v228
        %v230 = vrot.slane %v229, 2
        %v231 = vadd.f32 %v229, %v230
        %v232 = vrot.slane %v231, 1
        %v233 = vadd.f32 %v231, %v232
        %v234 = vadd.f32 %v218, %v220
        %v235 = vadd.f32 %v234, %v222
        %v236 = vadd.f32 %v235, %v224
        %v237 = vrot.slane %v236, 4
        %v238 = vadd.f32 %v236, %v237
        %v239 = vrot.slane %v238, 2
        %v240 = vadd.f32 %v238, %v239
        %v241 = vrot.slane %v240, 1
        %v242 = vadd.f32 %v240, %v241
        %244 = vset.pattern.permute.xlu0 0
        %245 = vperm.xlu0 %244, %v213
        %v246 = vpop.permute.xlu0 %245
        %249 = vset.pattern.permute.xlu0 0
        %250 = vperm.xlu0 %249, %v214
        %v251 = vpop.permute.xlu0 %250
        %254 = vset.pattern.permute.xlu0 0
        %255 = vperm.xlu0 %254, %v215
        %v256 = vpop.permute.xlu0 %255
        %259 = vset.pattern.permute.xlu0 0
        %260 = vperm.xlu0 %259, %v216
        %v261 = vpop.permute.xlu0 %260
        %v263 = vmul.f32 %v233, %v246
        %v264 = vmul.f32 %v242, %v246
        %v265 = vmul.f32 %v233, %v251
        %v266 = vmul.f32 %v242, %v251
        %v267 = vmul.f32 %v233, %v256
        %v268 = vmul.f32 %v242, %v256
        %v269 = vmul.f32 %v233, %v261
        %v270 = vmul.f32 %v242, %v261
        %271 = vset.pattern.permute.xlu0 3
        %272 = vperm.xlu0 %271, %v213
        %v273 = vpop.permute.xlu0 %272
        %275 = vset.pattern.permute.xlu0 3
        %276 = vperm.xlu0 %275, %v214
        %v277 = vpop.permute.xlu0 %276
        %279 = vset.pattern.permute.xlu0 3
        %280 = vperm.xlu0 %279, %v215
        %v281 = vpop.permute.xlu0 %280
        %283 = vset.pattern.permute.xlu0 3
        %284 = vperm.xlu0 %283, %v216
        %v285 = vpop.permute.xlu0 %284
        %v287 = vadd.f32 %v263, %v273
        %v288 = vadd.f32 %v264, %v273
        %v289 = vadd.f32 %v265, %v277
        %v290 = vadd.f32 %v266, %v277
        %v291 = vadd.f32 %v267, %v281
        %v292 = vadd.f32 %v268, %v281
        %v293 = vadd.f32 %v269, %v285
        %v294 = vadd.f32 %v270, %v285
        %v295 = vadd.f32 %v287, %v205
        %v296 = vadd.f32 %v288, %v206
        %v297 = vadd.f32 %v289, %v207
        %v298 = vadd.f32 %v290, %v208
        %v299 = vadd.f32 %v291, %v209
        %v300 = vadd.f32 %v292, %v210
        %v301 = vadd.f32 %v293, %v211
        %v302 = vadd.f32 %v294, %v212
        %v303 = vmul.f32 %v205, %v295
        %v304 = vmul.f32 %v206, %v296
        %v305 = vmul.f32 %v207, %v297
        %v306 = vmul.f32 %v208, %v298
        %v307 = vmul.f32 %v209, %v299
        %v308 = vmul.f32 %v210, %v300
        %v309 = vmul.f32 %v211, %v301
        %v310 = vmul.f32 %v212, %v302
        %v311 = vadd.f32 %v303, %v305
        %v312 = vadd.f32 %v311, %v307
        %v313 = vadd.f32 %v312, %v309
        %v314 = vrot.slane %v313, 4
        %v315 = vadd.f32 %v313, %v314
        %v316 = vrot.slane %v315, 2
        %v317 = vadd.f32 %v315, %v316
        %v318 = vrot.slane %v317, 1
        %v319 = vadd.f32 %v317, %v318
        %v320 = vadd.f32 %v304, %v306
        %v321 = vadd.f32 %v320, %v308
        %v322 = vadd.f32 %v321, %v310
        %v323 = vrot.slane %v322, 4
        %v324 = vadd.f32 %v322, %v323
        %v325 = vrot.slane %v324, 2
        %v326 = vadd.f32 %v324, %v325
        %v327 = vrot.slane %v326, 1
        %v328 = vadd.f32 %v326, %v327
        %329 = vset.pattern.permute.xlu0 1
        %330 = vperm.xlu0 %329, %v213
        %v331 = vpop.permute.xlu0 %330
        %333 = vset.pattern.permute.xlu0 1
        %334 = vperm.xlu0 %333, %v214
        %v335 = vpop.permute.xlu0 %334
        %337 = vset.pattern.permute.xlu0 1
        %338 = vperm.xlu0 %337, %v215
        %v339 = vpop.permute.xlu0 %338
        %341 = vset.pattern.permute.xlu0 1
        %342 = vperm.xlu0 %341, %v216
        %v343 = vpop.permute.xlu0 %342
        %v345 = vmul.f32 %v319, %v331
        %v346 = vmul.f32 %v328, %v331
        %v347 = vmul.f32 %v319, %v335
        %v348 = vmul.f32 %v328, %v335
        %v349 = vmul.f32 %v319, %v339
        %v350 = vmul.f32 %v328, %v339
        %v351 = vmul.f32 %v319, %v343
        %v352 = vmul.f32 %v328, %v343
        %353 = vset.pattern.permute.xlu0 4
        %354 = vperm.xlu0 %353, %v213
        %v355 = vpop.permute.xlu0 %354
        %357 = vset.pattern.permute.xlu0 4
        %358 = vperm.xlu0 %357, %v214
        %v359 = vpop.permute.xlu0 %358
        %361 = vset.pattern.permute.xlu0 4
        %362 = vperm.xlu0 %361, %v215
        %v363 = vpop.permute.xlu0 %362
        %365 = vset.pattern.permute.xlu0 4
        %366 = vperm.xlu0 %365, %v216
        %v367 = vpop.permute.xlu0 %366
        %v369 = vadd.f32 %v345, %v355
        %v370 = vadd.f32 %v346, %v355
        %v371 = vadd.f32 %v347, %v359
        %v372 = vadd.f32 %v348, %v359
        %v373 = vadd.f32 %v349, %v363
        %v374 = vadd.f32 %v350, %v363
        %v375 = vadd.f32 %v351, %v367
        %v376 = vadd.f32 %v352, %v367
        %v377 = vadd.f32 %v369, %v295
        %v378 = vadd.f32 %v370, %v296
        %v379 = vadd.f32 %v371, %v297
        %v380 = vadd.f32 %v372, %v298
        %v381 = vadd.f32 %v373, %v299
        %v382 = vadd.f32 %v374, %v300
        %v383 = vadd.f32 %v375, %v301
        %v384 = vadd.f32 %v376, %v302
        %v385 = vmul.f32 %v205, %v377
        %v386 = vmul.f32 %v206, %v378
        %v387 = vmul.f32 %v207, %v379
        %v388 = vmul.f32 %v208, %v380
        %v389 = vmul.f32 %v209, %v381
        %v390 = vmul.f32 %v210, %v382
        %v391 = vmul.f32 %v211, %v383
        %v392 = vmul.f32 %v212, %v384
        %v393 = vadd.f32 %v385, %v387
        %v394 = vadd.f32 %v393, %v389
        %v395 = vadd.f32 %v394, %v391
        %v396 = vrot.slane %v395, 4
        %v397 = vadd.f32 %v395, %v396
        %v398 = vrot.slane %v397, 2
        %v399 = vadd.f32 %v397, %v398
        %v400 = vrot.slane %v399, 1
        %v401 = vadd.f32 %v399, %v400
        %v402 = vadd.f32 %v386, %v388
        %v403 = vadd.f32 %v402, %v390
        %v404 = vadd.f32 %v403, %v392
        %v405 = vrot.slane %v404, 4
        %v406 = vadd.f32 %v404, %v405
        %v407 = vrot.slane %v406, 2
        %v408 = vadd.f32 %v406, %v407
        %v409 = vrot.slane %v408, 1
        %v410 = vadd.f32 %v408, %v409
        %411 = vset.pattern.permute.xlu0 2
        %412 = vperm.xlu0 %411, %v213
        %v413 = vpop.permute.xlu0 %412
        %415 = vset.pattern.permute.xlu0 2
        %416 = vperm.xlu0 %415, %v214
        %v417 = vpop.permute.xlu0 %416
        %419 = vset.pattern.permute.xlu0 2
        %420 = vperm.xlu0 %419, %v215
        %v421 = vpop.permute.xlu0 %420
        %423 = vset.pattern.permute.xlu0 2
        %424 = vperm.xlu0 %423, %v216
        %v425 = vpop.permute.xlu0 %424
        %v427 = vmul.f32 %v401, %v413
        %v428 = vmul.f32 %v410, %v413
        %v429 = vmul.f32 %v401, %v417
        %v430 = vmul.f32 %v410, %v417
        %v431 = vmul.f32 %v401, %v421
        %v432 = vmul.f32 %v410, %v421
        %v433 = vmul.f32 %v401, %v425
        %v434 = vmul.f32 %v410, %v425
        %435 = vset.pattern.permute.xlu0 5
        %436 = vperm.xlu0 %435, %v213
        %v437 = vpop.permute.xlu0 %436
        %439 = vset.pattern.permute.xlu0 5
        %440 = vperm.xlu0 %439, %v214
        %v441 = vpop.permute.xlu0 %440
        %443 = vset.pattern.permute.xlu0 5
        %444 = vperm.xlu0 %443, %v215
        %v445 = vpop.permute.xlu0 %444
        %447 = vset.pattern.permute.xlu0 5
        %448 = vperm.xlu0 %447, %v216
        %v449 = vpop.permute.xlu0 %448
        %v451 = vadd.f32 %v427, %v437
        %v452 = vadd.f32 %v428, %v437
        %v453 = vadd.f32 %v429, %v441
        %v454 = vadd.f32 %v430, %v441
        %v455 = vadd.f32 %v431, %v445
        %v456 = vadd.f32 %v432, %v445
        %v457 = vadd.f32 %v433, %v449
        %v458 = vadd.f32 %v434, %v449
        %v459 = vadd.f32 %v451, %v377
        %v460 = vadd.f32 %v452, %v378
        %v461 = vadd.f32 %v453, %v379
        %v462 = vadd.f32 %v454, %v380
        %v463 = vadd.f32 %v455, %v381
        %v464 = vadd.f32 %v456, %v382
        %v465 = vadd.f32 %v457, %v383
        %v466 = vadd.f32 %v458, %v384
        %v467 = vld [vmem:[%s1] sm:$0xff]
        %v468 = vld [vmem:[%s1 + $0x8] sm:$0xff]
        %v469 = vld [vmem:[%s1 + $0x10] sm:$0xff]
        %v470 = vld [vmem:[%s1 + $0x18] sm:$0xff]
        %v471 = vld [vmem:[%s1 + $0x20] sm:$0xff]
        %v472 = vld [vmem:[%s1 + $0x28] sm:$0xff]
        %v473 = vld [vmem:[%s1 + $0x30] sm:$0xff]
        %v474 = vld [vmem:[%s1 + $0x38] sm:$0xff]
        %475 = vset.pattern.permute.xlu0 6
        %476 = vperm.xlu0 %475, %v213
        %v477 = vpop.permute.xlu0 %476
        %479 = vset.pattern.permute.xlu0 6
        %480 = vperm.xlu0 %479, %v214
        %v481 = vpop.permute.xlu0 %480
        %483 = vset.pattern.permute.xlu0 6
        %484 = vperm.xlu0 %483, %v215
        %v485 = vpop.permute.xlu0 %484
        %487 = vset.pattern.permute.xlu0 6
        %488 = vperm.xlu0 %487, %v216
        %v489 = vpop.permute.xlu0 %488
        %vm491 = vcmask 261120
        %v493 = vsel %vm491, %v467, 0
        %v496 = vsel %vm491, %v468, 0
        %v499 = vsel %vm491, %v469, 0
        %v502 = vsel %vm491, %v470, 0
        %504 = vmatprep.subr.mxu0 0.0
        %505 = vmatpush1.msra.mxu0 0.0
        %506 = vmatprep.subr.mxu0 0.0
        %507 = vmatpush1.msra.mxu0 0.0
        %508 = vmatprep.subr.mxu0 0.0
        %509 = vmatpush1.msra.mxu0 0.0
        %510 = vmatprep.subr.mxu0 0.0
        %511 = vmatpush1.msra.mxu0 0.0
        %512 = vmatprep.subr.mxu0 0.0
        %513 = vmatpush1.msra.mxu0 0.0
        %514 = vmatprep.subr.mxu0 0.0
        %515 = vmatpush1.msra.mxu0 0.0
        %516 = vmatprep.subr.mxu0 0.0
        %517 = vmatpush1.msra.mxu0 0.0
        %518 = vmatprep.subr.mxu0 0.0
        %519 = vmatpush1.msra.mxu0 0.0
        %520 = vmatprep.subr.mxu0 0.0
        %521 = vmatpush1.msra.mxu0 0.0
        %522 = vmatprep.subr.mxu0 0.0
        %523 = vmatpush1.msra.mxu0 0.0
        %524 = vmatprep.subr.mxu0 0.0
        %525 = vmatpush1.msra.mxu0 0.0
        %526 = vmatprep.subr.mxu0 0.0
        %527 = vmatpush1.msra.mxu0 0.0
        %528 = vmatprep.subr.mxu0 %v212
        %529 = vmatpush1.msra.mxu0 %v211
        %530 = vmatprep.subr.mxu0 %v210
        %531 = vmatpush1.msra.mxu0 %v209
        %532 = vmatprep.subr.mxu0 %v208
        %533 = vmatpush1.msra.mxu0 %v207
        %534 = vmatprep.subr.mxu0 %v206
        %535 = vmatpush1.msra.mxu0 %v205
        %536 = vmatprep.subr.mxu0 0.0
        %537 = vmatpush2.msra.mxu0 0.0
        %538 = vmatprep.subr.mxu0 0.0
        %539 = vmatpush2.msra.mxu0 0.0
        %540 = vmatprep.subr.mxu0 0.0
        %541 = vmatpush2.msra.mxu0 0.0
        %542 = vmatprep.subr.mxu0 0.0
        %543 = vmatpush2.msra.mxu0 0.0
        %544 = vmatprep.subr.mxu0 0.0
        %545 = vmatpush2.msra.mxu0 0.0
        %546 = vmatprep.subr.mxu0 0.0
        %547 = vmatpush2.msra.mxu0 0.0
        %548 = vmatprep.subr.mxu0 0.0
        %549 = vmatpush2.msra.mxu0 0.0
        %550 = vmatprep.subr.mxu0 0.0
        %551 = vmatpush2.msra.mxu0 0.0
        %552 = vmatprep.subr.mxu0 0.0
        %553 = vmatpush2.msra.mxu0 0.0
        %554 = vmatprep.subr.mxu0 0.0
        %555 = vmatpush2.msra.mxu0 0.0
        %556 = vmatprep.subr.mxu0 0.0
        %557 = vmatpush2.msra.mxu0 0.0
        %558 = vmatprep.subr.mxu0 0.0
        %559 = vmatpush2.msra.mxu0 0.0
        %560 = vmatprep.subr.mxu0 0.0
        %561 = vmatpush2.msra.mxu0 0.0
        %562 = vmatprep.subr.mxu0 0.0
        %563 = vmatpush2.msra.mxu0 0.0
        %564 = vmatprep.subr.mxu0 0.0
        %565 = vmatpush2.msra.mxu0 0.0
        %566 = vmatprep.subr.mxu0 0.0
        %567 = vmatpush2.msra.mxu0 0.0
        %568 = vmatprep.mubr.f32.mxu0 0.0
        %569 = vmatmul.mubr.f32.gmra.mxu0 %v493
        %v570 = vpop.f32.mrf.mxu0
        %v571 = vadd.f32 %v477, %v570
        %v572 = vpop.f32.mrf.mxu0
        %v573 = vadd.f32 %v477, %v572
        %574 = vmatprep.mubr.f32.mxu0 0.0
        %575 = vmatmul.mubr.f32.gmra.mxu0 %v496
        %v576 = vpop.f32.mrf.mxu0
        %v577 = vadd.f32 %v481, %v576
        %v578 = vpop.f32.mrf.mxu0
        %v579 = vadd.f32 %v481, %v578
        %580 = vmatprep.mubr.f32.mxu0 0.0
        %581 = vmatmul.mubr.f32.gmra.mxu0 %v499
        %v582 = vpop.f32.mrf.mxu0
        %v583 = vadd.f32 %v485, %v582
        %v584 = vpop.f32.mrf.mxu0
        %v585 = vadd.f32 %v485, %v584
        %586 = vmatprep.mubr.f32.mxu0 0.0
        %587 = vmatmul.mubr.f32.gmra.mxu0 %v502
        %v588 = vpop.f32.mrf.mxu0
        %v589 = vadd.f32 %v489, %v588
        %v590 = vpop.f32.mrf.mxu0
        %v591 = vadd.f32 %v489, %v590
        %592 = vdwg.mxu0
        %v593 = vmax.f32 %v571, 0.0
        %v594 = vmax.f32 %v573, 0.0
        %v595 = vmax.f32 %v577, 0.0
        %v596 = vmax.f32 %v579, 0.0
        %v597 = vmax.f32 %v583, 0.0
        %v598 = vmax.f32 %v585, 0.0
        %v599 = vmax.f32 %v589, 0.0
        %v600 = vmax.f32 %v591, 0.0
        %601 = vset.pattern.permute.xlu0 7
        %602 = vperm.xlu0 %601, %v213
        %v603 = vpop.permute.xlu0 %602
        %605 = vset.pattern.permute.xlu0 7
        %606 = vperm.xlu0 %605, %v214
        %v607 = vpop.permute.xlu0 %606
        %609 = vset.pattern.permute.xlu0 7
        %610 = vperm.xlu0 %609, %v215
        %v611 = vpop.permute.xlu0 %610
        %613 = vset.pattern.permute.xlu0 7
        %614 = vperm.xlu0 %613, %v216
        %v615 = vpop.permute.xlu0 %614
        %v618 = vsel %vm491, %v471, 0
        %v621 = vsel %vm491, %v472, 0
        %v624 = vsel %vm491, %v473, 0
        %v627 = vsel %vm491, %v474, 0
        %629 = vmatprep.subr.mxu0 0.0
        %630 = vmatpush1.msra.mxu0 0.0
        %631 = vmatprep.subr.mxu0 0.0
        %632 = vmatpush1.msra.mxu0 0.0
        %633 = vmatprep.subr.mxu0 0.0
        %634 = vmatpush1.msra.mxu0 0.0
        %635 = vmatprep.subr.mxu0 0.0
        %636 = vmatpush1.msra.mxu0 0.0
        %637 = vmatprep.subr.mxu0 0.0
        %638 = vmatpush1.msra.mxu0 0.0
        %639 = vmatprep.subr.mxu0 0.0
        %640 = vmatpush1.msra.mxu0 0.0
        %641 = vmatprep.subr.mxu0 0.0
        %642 = vmatpush1.msra.mxu0 0.0
        %643 = vmatprep.subr.mxu0 0.0
        %644 = vmatpush1.msra.mxu0 0.0
        %645 = vmatprep.subr.mxu0 0.0
        %646 = vmatpush1.msra.mxu0 0.0
        %647 = vmatprep.subr.mxu0 0.0
        %648 = vmatpush1.msra.mxu0 0.0
        %649 = vmatprep.subr.mxu0 0.0
        %650 = vmatpush1.msra.mxu0 0.0
        %651 = vmatprep.subr.mxu0 0.0
        %652 = vmatpush1.msra.mxu0 0.0
        %653 = vmatprep.subr.mxu0 %v600
        %654 = vmatpush1.msra.mxu0 %v599
        %655 = vmatprep.subr.mxu0 %v598
        %656 = vmatpush1.msra.mxu0 %v597
        %657 = vmatprep.subr.mxu0 %v596
        %658 = vmatpush1.msra.mxu0 %v595
        %659 = vmatprep.subr.mxu0 %v594
        %660 = vmatpush1.msra.mxu0 %v593
        %661 = vmatprep.subr.mxu0 0.0
        %662 = vmatpush2.msra.mxu0 0.0
        %663 = vmatprep.subr.mxu0 0.0
        %664 = vmatpush2.msra.mxu0 0.0
        %665 = vmatprep.subr.mxu0 0.0
        %666 = vmatpush2.msra.mxu0 0.0
        %667 = vmatprep.subr.mxu0 0.0
        %668 = vmatpush2.msra.mxu0 0.0
        %669 = vmatprep.subr.mxu0 0.0
        %670 = vmatpush2.msra.mxu0 0.0
        %671 = vmatprep.subr.mxu0 0.0
        %672 = vmatpush2.msra.mxu0 0.0
        %673 = vmatprep.subr.mxu0 0.0
        %674 = vmatpush2.msra.mxu0 0.0
        %675 = vmatprep.subr.mxu0 0.0
        %676 = vmatpush2.msra.mxu0 0.0
        %677 = vmatprep.subr.mxu0 0.0
        %678 = vmatpush2.msra.mxu0 0.0
        %679 = vmatprep.subr.mxu0 0.0
        %680 = vmatpush2.msra.mxu0 0.0
        %681 = vmatprep.subr.mxu0 0.0
        %682 = vmatpush2.msra.mxu0 0.0
        %683 = vmatprep.subr.mxu0 0.0
        %684 = vmatpush2.msra.mxu0 0.0
        %685 = vmatprep.subr.mxu0 0.0
        %686 = vmatpush2.msra.mxu0 0.0
        %687 = vmatprep.subr.mxu0 0.0
        %688 = vmatpush2.msra.mxu0 0.0
        %689 = vmatprep.subr.mxu0 0.0
        %690 = vmatpush2.msra.mxu0 0.0
        %691 = vmatprep.subr.mxu0 0.0
        %692 = vmatpush2.msra.mxu0 0.0
        %693 = vmatprep.mubr.f32.mxu0 0.0
        %694 = vmatmul.mubr.f32.gmra.mxu0 %v618
        %v695 = vpop.f32.mrf.mxu0
        %v696 = vadd.f32 %v603, %v695
        %v697 = vpop.f32.mrf.mxu0
        %v698 = vadd.f32 %v603, %v697
        %699 = vmatprep.mubr.f32.mxu0 0.0
        %700 = vmatmul.mubr.f32.gmra.mxu0 %v621
        %v701 = vpop.f32.mrf.mxu0
        %v702 = vadd.f32 %v607, %v701
        %v703 = vpop.f32.mrf.mxu0
        %v704 = vadd.f32 %v607, %v703
        %705 = vmatprep.mubr.f32.mxu0 0.0
        %706 = vmatmul.mubr.f32.gmra.mxu0 %v624
        %v707 = vpop.f32.mrf.mxu0
        %v708 = vadd.f32 %v611, %v707
        %v709 = vpop.f32.mrf.mxu0
        %v710 = vadd.f32 %v611, %v709
        %711 = vmatprep.mubr.f32.mxu0 0.0
        %712 = vmatmul.mubr.f32.gmra.mxu0 %v627
        %v713 = vpop.f32.mrf.mxu0
        %v714 = vadd.f32 %v615, %v713
        %v715 = vpop.f32.mrf.mxu0
        %v716 = vadd.f32 %v615, %v715
        %717 = vdwg.mxu0
        %v718 = vmax.f32 %v696, 0.0
        %v719 = vmax.f32 %v698, 0.0
        %v720 = vmax.f32 %v702, 0.0
        %v721 = vmax.f32 %v704, 0.0
        %v722 = vmax.f32 %v708, 0.0
        %v723 = vmax.f32 %v710, 0.0
        %v724 = vmax.f32 %v714, 0.0
        %v725 = vmax.f32 %v716, 0.0
        %v726 = vld [vmem:[%s1 + $0x40] sm:$0x1]
        %v727 = vld [vmem:[%s1 + $0x41] sm:$0x1]
        %v728 = vld [vmem:[%s2] sm:$0x1]
        %v730 = vsel %vm491, %v727, 0
        %732 = vmatprep.subr.mxu0 0.0
        %733 = vmatpush1.msra.mxu0 0.0
        %734 = vmatprep.subr.mxu0 0.0
        %735 = vmatpush1.msra.mxu0 0.0
        %736 = vmatprep.subr.mxu0 0.0
        %737 = vmatpush1.msra.mxu0 0.0
        %738 = vmatprep.subr.mxu0 0.0
        %739 = vmatpush1.msra.mxu0 0.0
        %740 = vmatprep.subr.mxu0 0.0
        %741 = vmatpush1.msra.mxu0 0.0
        %742 = vmatprep.subr.mxu0 0.0
        %743 = vmatpush1.msra.mxu0 0.0
        %744 = vmatprep.subr.mxu0 0.0
        %745 = vmatpush1.msra.mxu0 0.0
        %746 = vmatprep.subr.mxu0 0.0
        %747 = vmatpush1.msra.mxu0 0.0
        %748 = vmatprep.subr.mxu0 0.0
        %749 = vmatpush1.msra.mxu0 0.0
        %750 = vmatprep.subr.mxu0 0.0
        %751 = vmatpush1.msra.mxu0 0.0
        %752 = vmatprep.subr.mxu0 0.0
        %753 = vmatpush1.msra.mxu0 0.0
        %754 = vmatprep.subr.mxu0 0.0
        %755 = vmatpush1.msra.mxu0 0.0
        %756 = vmatprep.subr.mxu0 %v725
        %757 = vmatpush1.msra.mxu0 %v724
        %758 = vmatprep.subr.mxu0 %v723
        %759 = vmatpush1.msra.mxu0 %v722
        %760 = vmatprep.subr.mxu0 %v721
        %761 = vmatpush1.msra.mxu0 %v720
        %762 = vmatprep.subr.mxu0 %v719
        %763 = vmatpush1.msra.mxu0 %v718
        %764 = vmatprep.subr.mxu0 0.0
        %765 = vmatpush2.msra.mxu0 0.0
        %766 = vmatprep.subr.mxu0 0.0
        %767 = vmatpush2.msra.mxu0 0.0
        %768 = vmatprep.subr.mxu0 0.0
        %769 = vmatpush2.msra.mxu0 0.0
        %770 = vmatprep.subr.mxu0 0.0
        %771 = vmatpush2.msra.mxu0 0.0
        %772 = vmatprep.subr.mxu0 0.0
        %773 = vmatpush2.msra.mxu0 0.0
        %774 = vmatprep.subr.mxu0 0.0
        %775 = vmatpush2.msra.mxu0 0.0
        %776 = vmatprep.subr.mxu0 0.0
        %777 = vmatpush2.msra.mxu0 0.0
        %778 = vmatprep.subr.mxu0 0.0
        %779 = vmatpush2.msra.mxu0 0.0
        %780 = vmatprep.subr.mxu0 0.0
        %781 = vmatpush2.msra.mxu0 0.0
        %782 = vmatprep.subr.mxu0 0.0
        %783 = vmatpush2.msra.mxu0 0.0
        %784 = vmatprep.subr.mxu0 0.0
        %785 = vmatpush2.msra.mxu0 0.0
        %786 = vmatprep.subr.mxu0 0.0
        %787 = vmatpush2.msra.mxu0 0.0
        %788 = vmatprep.subr.mxu0 0.0
        %789 = vmatpush2.msra.mxu0 0.0
        %790 = vmatprep.subr.mxu0 0.0
        %791 = vmatpush2.msra.mxu0 0.0
        %792 = vmatprep.subr.mxu0 0.0
        %793 = vmatpush2.msra.mxu0 0.0
        %794 = vmatprep.subr.mxu0 0.0
        %795 = vmatpush2.msra.mxu0 0.0
        %796 = vmatprep.mubr.f32.mxu0 0.0
        %797 = vmatmul.mubr.f32.gmra.mxu0 %v730
        %v798 = vpop.f32.mrf.mxu0
        %v799 = vadd.f32 0.0, %v798
        %v800 = vpop.f32.mrf.mxu0
        %v801 = vadd.f32 0.0, %v800
        %802 = vdwg.mxu0
        %v804 = vsel %vm491, %v726, 0
        %806 = vmatprep.subr.mxu0 0.0
        %807 = vmatpush1.msra.mxu0 0.0
        %808 = vmatprep.subr.mxu0 0.0
        %809 = vmatpush1.msra.mxu0 0.0
        %810 = vmatprep.subr.mxu0 0.0
        %811 = vmatpush1.msra.mxu0 0.0
        %812 = vmatprep.subr.mxu0 0.0
        %813 = vmatpush1.msra.mxu0 0.0
        %814 = vmatprep.subr.mxu0 0.0
        %815 = vmatpush1.msra.mxu0 0.0
        %816 = vmatprep.subr.mxu0 0.0
        %817 = vmatpush1.msra.mxu0 0.0
        %818 = vmatprep.subr.mxu0 0.0
        %819 = vmatpush1.msra.mxu0 0.0
        %820 = vmatprep.subr.mxu0 0.0
        %821 = vmatpush1.msra.mxu0 0.0
        %822 = vmatprep.subr.mxu0 0.0
        %823 = vmatpush1.msra.mxu0 0.0
        %824 = vmatprep.subr.mxu0 0.0
        %825 = vmatpush1.msra.mxu0 0.0
        %826 = vmatprep.subr.mxu0 0.0
        %827 = vmatpush1.msra.mxu0 0.0
        %828 = vmatprep.subr.mxu0 0.0
        %829 = vmatpush1.msra.mxu0 0.0
        %830 = vmatprep.subr.mxu0 %v466
        %831 = vmatpush1.msra.mxu0 %v465
        %832 = vmatprep.subr.mxu0 %v464
        %833 = vmatpush1.msra.mxu0 %v463
        %834 = vmatprep.subr.mxu0 %v462
        %835 = vmatpush1.msra.mxu0 %v461
        %836 = vmatprep.subr.mxu0 %v460
        %837 = vmatpush1.msra.mxu0 %v459
        %838 = vmatprep.subr.mxu0 0.0
        %839 = vmatpush2.msra.mxu0 0.0
        %840 = vmatprep.subr.mxu0 0.0
        %841 = vmatpush2.msra.mxu0 0.0
        %842 = vmatprep.subr.mxu0 0.0
        %843 = vmatpush2.msra.mxu0 0.0
        %844 = vmatprep.subr.mxu0 0.0
        %845 = vmatpush2.msra.mxu0 0.0
        %846 = vmatprep.subr.mxu0 0.0
        %847 = vmatpush2.msra.mxu0 0.0
        %848 = vmatprep.subr.mxu0 0.0
        %849 = vmatpush2.msra.mxu0 0.0
        %850 = vmatprep.subr.mxu0 0.0
        %851 = vmatpush2.msra.mxu0 0.0
        %852 = vmatprep.subr.mxu0 0.0
        %853 = vmatpush2.msra.mxu0 0.0
        %854 = vmatprep.subr.mxu0 0.0
        %855 = vmatpush2.msra.mxu0 0.0
        %856 = vmatprep.subr.mxu0 0.0
        %857 = vmatpush2.msra.mxu0 0.0
        %858 = vmatprep.subr.mxu0 0.0
        %859 = vmatpush2.msra.mxu0 0.0
        %860 = vmatprep.subr.mxu0 0.0
        %861 = vmatpush2.msra.mxu0 0.0
        %862 = vmatprep.subr.mxu0 0.0
        %863 = vmatpush2.msra.mxu0 0.0
        %864 = vmatprep.subr.mxu0 0.0
        %865 = vmatpush2.msra.mxu0 0.0
        %866 = vmatprep.subr.mxu0 0.0
        %867 = vmatpush2.msra.mxu0 0.0
        %868 = vmatprep.subr.mxu0 0.0
        %869 = vmatpush2.msra.mxu0 0.0
        %870 = vmatprep.mubr.f32.mxu0 0.0
        %871 = vmatmul.mubr.f32.gmra.mxu0 %v804
        %v872 = vpop.f32.mrf.mxu0
        %v873 = vadd.f32 %v799, %v872
        %v874 = vpop.f32.mrf.mxu0
        %v875 = vadd.f32 %v801, %v874
        %876 = vdwg.mxu0
        %878 = vset.pattern.permute.xlu0 8
        %879 = vperm.xlu0 %878, %v728
        %v880 = vpop.permute.xlu0 %879
        %v882 = vadd.f32 %v873, %v880
        %v883 = vadd.f32 %v875, %v880
        %v886 = vcombine.low %v882, %v883
        %v888 = vunpack.c.l.s4 1966171168
        %v889 = vunpack.c.0.s8 %v888
        %v890 = vlaneseq
        %v891 = vshrl.u32 %v890, 7
        %v892 = vsub.s32 %v889, %v891
        %v893 = vrot.slane %v886, %v892
        %v895 = vunpack.c.l.s4 1966171168
        %v896 = vunpack.c.0.s8 %v895
        %v897 = vlaneseq
        %v898 = vshrl.u32 %v897, 7
        %v899 = vsub.s32 %v896, %v898
        %v900 = vrot.slane %v893, %v899
        %v902 = vlaneseq
        %vm903 = vcmp.ge.s32.totalorder %v902, 0
        %vm904 = vcmp.lt.s32.totalorder %v902, 256
        %vm905 = vmand %vm903, %vm904
        %906 = vst.msk [vmem:[%s202] sm:$0x3] %vm905, %v900
        %s907 = sand.u32 %s93, 1
        %s908 = scalar_lea.sflag [#allocation4], %s907
        %s909 = sand.u32 %s93, 1
        %s910 = smul.addr %s909, 2
        %s911 = scalar_lea.vmem [#allocation3], %s910
        // Predicated region
        $region56: #{tpu_custom_call.1} parent=50 // pred_check
          %p912 = pneg %p103
        $region57: #{tpu_custom_call.1} parent=50 // pred_check_branch
          %914 = sbr.rel (%p912) target = $region59
        $region58: #{tpu_custom_call.1} parent=50 // pred_region
          %s915 = smul.u32 2, %s17
          %s917 = ssub.s32 32, 32
          %918 = vsyncadd %s908, %s917
          %s919 = smul.addr %s915, 16
          %s920 = scalar_lea.hbm %s3, %s919
          %s922 = sshll.u32 %s911, 4
          %s923 = int_to_ptr.vmem [resolvable:$true] %s922
          %925 = dma.vmem_to_hbm [thread:$0]  %s923, 32, %s920, %s908
        $region59: #{tpu_custom_call.1} parent=50 // pred_fallthru
          _
      $region51: #{tpu_custom_call.1} parent=5 // pred_fallthru
        _
      %p926 = scmp.le.s32.totalorder 2, %s12
      // Predicated region
      $region60: #{tpu_custom_call.1} parent=5 // pred_check
        %p927 = pneg %p926
      $region61: #{tpu_custom_call.1} parent=5 // pred_check_branch
        %929 = sbr.rel (%p927) target = $region63
      $region62: #{tpu_custom_call.1} parent=5 // pred_region
        %s930 = ssub.s32 %s12, 2
        // Predicated region
        $region64: #{tpu_custom_call.1} parent=62 // pred_check
          %p931 = pneg %p109
        $region65: #{tpu_custom_call.1} parent=62 // pred_check_branch
          %933 = sbr.rel (%p931) target = $region67
        $region66: #{tpu_custom_call.1} parent=62 // pred_region
          %s934 = sand.u32 %s94, 1
          %s935 = scalar_lea.sflag [#allocation4], %s934
          %s936 = sand.u32 %s94, 1
          %s937 = smul.addr %s936, 2
          %s938 = scalar_lea.vmem [#allocation3], %s937
          %939 = dma.done %s935, 32
        $region67: #{tpu_custom_call.1} parent=62 // pred_fallthru
          _
      $region63: #{tpu_custom_call.1} parent=5 // pred_fallthru
        _
    $region6: #{tpu_custom_call.1} parent=1 // loop_footer
      %s16 = sadd.s32 1, %s12
    $region7: #{tpu_custom_call.1} parent=1 // loop_footer_branch
      %11 = sbr.rel target = $region3
    $region8: #{tpu_custom_call.1} parent=1 // loop_exit
      _
    %940 = vsyncpa [#allocation4], 1
    %s941 = scalar_lea.sflag [#allocation4], 1
    %942 = vsyncpa %s941, 1

</llo_original>
